<compile_context>
chip_gen: v5e
topology: v5e:2x2
jax: 0.10.0
libtpu: 0.0.40
codegen_flags: <defaults>
</compile_context>

<pallas_src>
import functools

import jax
import jax.numpy as jnp
from jax.experimental import pallas as pl
from jax.experimental.pallas import tpu as pltpu


LANE = 128
_TARGET_BLOCK_BYTES = 2 * 1024 * 1024   # ~2 MiB x-block amortizes grid-step cost


def _round_up(x, m):
    return (x + m - 1) // m * m


def _vmem_capacity_bytes():
    """Physical VMEM of the current TPU generation (conservative fallback)."""
    default = 64 * 1024 * 1024            # v7x per-TC physical VMEM (smallest)
    try:
        cap = int(getattr(pltpu.get_tpu_info(), "vmem_capacity_bytes", 0))
        if cap > 0:
            return cap
    except Exception:
        pass
    return default


def _pick_tile_c(c_padded, n, itemsize):
    """Pick the lane tile + a backing vmem_limit for this TPU generation.

    The double-buffered x + y working set (2 bufs each) must fit a budget
    derived from the chip's physical VMEM (v5e/v6e 128 MiB -> 32 MiB budget,
    v7x 64 MiB -> 16 MiB).  Among fitting tiles we prefer >= 2 grid steps (so
    the "parallel" C axis can shard across both v7x TensorCores; near-zero
    cost on single-TC chips) and the smallest tile whose x block reaches
    ~2 MiB (diminishing returns beyond that per measured Pallas data).
    """
    phys = _vmem_capacity_bytes()
    budget = max(4 << 20, min(phys // 4, 32 << 20))
    blocks = c_padded // LANE
    divisors = [d * LANE for d in range(1, blocks + 1) if blocks % d == 0]
    fitting = [t for t in divisors if 4 * n * t * itemsize <= budget]
    if not fitting:
        # TODO(synk): for very large N, add an N grid axis ("arbitrary") with a
        # sum/sum-sq VMEM accumulator + second normalize pass instead of
        # keeping the full batch resident per lane tile.
        tile_c = LANE
    else:
        multi = [t for t in fitting if c_padded // t >= 2]
        pool = multi if multi else fitting
        big = [t for t in pool if n * t * itemsize >= _TARGET_BLOCK_BYTES]
        tile_c = min(big) if big else max(pool)
    vmem_limit = min(phys * 3 // 4, max(32 << 20, 10 * n * tile_c * itemsize))
    return tile_c, int(vmem_limit)


# ----------------------------- Pallas kernels ------------------------------

def _col_valid_mask(c, tile_c):
    """(1, TILE_C) mask of columns that lie inside the real feature range."""
    j = pl.program_id(0)
    col = jax.lax.broadcasted_iota(jnp.int32, (1, tile_c), 1) + j * tile_c
    return col < c


def _bn_train_kernel(eps, momentum, unbiased_factor, c, tile_c, masked,
                     t_ref, x_ref, w_ref, b_ref, rm_ref, rv_ref,
                     y_ref, new_rm_ref, new_rv_ref):
    """One lane tile: batch stats + affine + fused running-stat momentum update."""
    del t_ref  # only used by the BlockSpec index_maps (row selection)
    x = x_ref[...].astype(jnp.float32)                           # (N, TILE_C)
    if masked:
        valid = _col_valid_mask(c, tile_c)                       # (1, TILE_C)
        x = jnp.where(valid, x, 0.0)   # neutralize garbage edge-block columns
    mean = jnp.mean(x, axis=0, keepdims=True)                    # (1, TILE_C)
    centered = x - mean
    var = jnp.mean(centered * centered, axis=0, keepdims=True)   # biased var
    scale = jax.lax.rsqrt(var + eps) * w_ref[...].astype(jnp.float32)
    # Columns >= c exist only in the (padded) edge block; Pallas drops their
    # out-of-range stores, so no masked store is needed for y.
    y_ref[...] = (centered * scale + b_ref[...].astype(jnp.float32)).astype(y_ref.dtype)

    # PyTorch updates running_var with the *unbiased* batch variance.
    m = momentum
    new_rm = (1.0 - m) * rm_ref[...] + m * mean[None]
    new_rv = (1.0 - m) * rv_ref[...] + m * (unbiased_factor * var)[None]
    if masked:
        # Keep the inert lane-padding columns of the persistent running
        # buffers at their init values (they ARE in-bounds for those buffers).
        new_rm = jnp.where(valid[None], new_rm, rm_ref[...])
        new_rv = jnp.where(valid[None], new_rv, rv_ref[...])
    new_rm_ref[...] = new_rm
    new_rv_ref[...] = new_rv


def _bn_eval_kernel(eps, c, tile_c, masked,
                    t_ref, x_ref, rm_ref, rv_ref, w_ref, b_ref, y_ref):
    """One lane tile: y = x * scale + shift with folded per-tile scale/shift."""
    del t_ref
    rm = rm_ref[...][0]                                          # (1, TILE_C)
    rv = rv_ref[...][0]
    scale = w_ref[...].astype(jnp.float32) * jax.lax.rsqrt(rv + eps)
    shift = b_ref[...].astype(jnp.float32) - rm * scale
    x = x_ref[...].astype(jnp.float32)
    if masked:
        x = jnp.where(_col_valid_mask(c, tile_c), x, 0.0)
    y_ref[...] = (x * scale + shift).astype(y_ref.dtype)


# ------------------------------ pallas_call glue ----------------------------

@functools.lru_cache(maxsize=None)
def _build_train_step(n, c, c_padded, max_length, dtype_name, eps, momentum):
    dtype = jnp.dtype(dtype_name)
    tile_c, vmem_limit = _pick_tile_c(c_padded, n, dtype.itemsize)
    grid = (c_padded // tile_c,)
    masked = c_padded != c
    # PyTorch uses n/(n-1); batch-size-1 training is degenerate in PyTorch
    # (inf/NaN running var) — we keep it finite instead.
    unbiased_factor = float(n) / float(max(n - 1, 1))

    x_spec = pl.BlockSpec((n, tile_c), lambda j, t: (0, j))
    par_spec = pl.BlockSpec((1, tile_c), lambda j, t: (0, j))
    row_spec = pl.BlockSpec((1, 1, tile_c), lambda j, t: (t[0], 0, j))

    call = pl.pallas_call(
        functools.partial(_bn_train_kernel, eps, momentum, unbiased_factor,
                          c, tile_c, masked),
        out_shape=(
            jax.ShapeDtypeStruct((n, c), dtype),                           # y
            jax.ShapeDtypeStruct((max_length, 1, c_padded), jnp.float32),  # running_mean
            jax.ShapeDtypeStruct((max_length, 1, c_padded), jnp.float32),  # running_var
        ),
        grid_spec=pltpu.PrefetchScalarGridSpec(
            num_scalar_prefetch=1,
            grid=grid,
            in_specs=[x_spec, par_spec, par_spec, row_spec, row_spec],
            out_specs=(x_spec, row_spec, row_spec),
        ),
        # Inputs (incl. the scalar-prefetch arg) are (t, x, w, b, rm, rv):
        # alias the running buffers to their updated outputs so only the
        # selected timestep's row is rewritten; other rows stay in place
        # (regression-tested in __main__: rows != t keep their init values).
        input_output_aliases={4: 1, 5: 2},
        compiler_params=pltpu.CompilerParams(
            dimension_semantics=("parallel",),
            vmem_limit_bytes=vmem_limit),
    )

    def step(t, x, weight, bias, running_mean, running_var):
        return call(t, x, weight, bias, running_mean, running_var)

    # Donate the running buffers so the row-t update really happens in place
    # instead of XLA copying the whole (max_length, 1, Cp) buffers first.
    return jax.jit(step, donate_argnums=(4, 5))


@functools.lru_cache(maxsize=None)
def _build_eval_step(n, c, c_padded, max_length, dtype_name, eps):
    dtype = jnp.dtype(dtype_name)
    tile_c, vmem_limit = _pick_tile_c(c_padded, n, dtype.itemsize)
    grid = (c_padded // tile_c,)
    masked = c_padded != c

    x_spec = pl.BlockSpec((n, tile_c), lambda j, t: (0, j))
    par_spec = pl.BlockSpec((1, tile_c), lambda j, t: (0, j))
    row_spec = pl.BlockSpec((1, 1, tile_c), lambda j, t: (t[0], 0, j))

    call = pl.pallas_call(
        functools.partial(_bn_eval_kernel, eps, c, tile_c, masked),
        out_shape=jax.ShapeDtypeStruct((n, c), dtype),
        grid_spec=pltpu.PrefetchScalarGridSpec(
            num_scalar_prefetch=1,
            grid=grid,
            in_specs=[x_spec, row_spec, row_spec, par_spec, par_spec],
            out_specs=x_spec,
        ),
        compiler_params=pltpu.CompilerParams(
            dimension_semantics=("parallel",),
            vmem_limit_bytes=vmem_limit),
    )

    def step(t, x, running_mean, running_var, weight, bias):
        return call(t, x, running_mean, running_var, weight, bias)

    return jax.jit(step)


# ------------------------------- Module wrapper -----------------------------

class SeparatedBatchNorm1d:
    """JAX/Pallas port of rnnlib.Cells.SeparatedBatchNorm1d (forward pass)."""

    def __init__(self, num_features, max_length, eps=1e-5, momentum=0.1,
                 affine=True, *, key):
        self.num_features = num_features
        self.max_length = max_length
        self.eps = float(eps)
        self.momentum = float(momentum)
        self.affine = affine
        self._c_padded = _round_up(num_features, LANE)

        if affine:
            w = jax.random.uniform(key, (num_features,), jnp.float32)  # weight.uniform_()
        else:
            w = jnp.ones((num_features,), jnp.float32)
        # Parameters / buffers are stored lane-padded ONCE at init; the padded
        # columns are inert (weight pad = 0, bias pad = 0, var pad = 1).
        self.weight = jnp.zeros((1, self._c_padded), jnp.float32).at[0, :num_features].set(w)
        self.bias = jnp.zeros((1, self._c_padded), jnp.float32)       # bias.zero_()
        # Per-timestep running stats, stored as (max_length, 1, Cp) so one
        # timestep's row is a clean (1, TILE_C)-blockable slab for the kernel.
        self._running_mean = jnp.zeros((max_length, 1, self._c_padded), jnp.float32)
        self._running_var = jnp.ones((max_length, 1, self._c_padded), jnp.float32)

    # Unpadded views of the per-timestep buffers (for inspection / reference).
    @property
    def running_mean(self):
        return self._running_mean[:, 0, :self.num_features]

    @property
    def running_var(self):
        return self._running_var[:, 0, :self.num_features]

    def forward(self, x, time, training=True):
        if x.ndim != 2 or x.shape[1] != self.num_features:
            raise ValueError('got {}-feature tensor, expected {}'.format(
                x.shape[-1], self.num_features))
        n = x.shape[0]
        # time >= max_length clamps to the last timestep (as in the PyTorch module)
        t = jnp.minimum(jnp.asarray(time, jnp.int32), self.max_length - 1).reshape(1)
        dtype_name = jnp.dtype(x.dtype).name

        if training:
            step = _build_train_step(n, self.num_features, self._c_padded,
                                     self.max_length, dtype_name,
                                     self.eps, self.momentum)
            y, new_rm, new_rv = step(t, x, self.weight, self.bias,
                                     self._running_mean, self._running_var)
            self._running_mean = new_rm
            self._running_var = new_rv
            return y
        else:
            step = _build_eval_step(n, self.num_features, self._c_padded,
                                    self.max_length, dtype_name, self.eps)
            return step(t, x, self._running_mean, self._running_var,
                        self.weight, self.bias)

    __call__ = forward


# --------------------------------- main --------------------------------------

def _run_and_check(key, batch, num_features, max_length, t_train):
    k_x, k_w = jax.random.split(key)
    x = jax.random.normal(k_x, (batch, num_features), jnp.float32)
    bn = SeparatedBatchNorm1d(num_features, max_length, key=k_w)
    w = bn.weight[0, :num_features]
    b = bn.bias[0, :num_features]
    eps = bn.eps

    # --- training-mode forward (also updates running stats of row t_train) ---
    y_train = jax.block_until_ready(bn(x, time=t_train, training=True))

    mean_ref = jnp.mean(x, axis=0, keepdims=True)
    var_ref = jnp.mean((x - mean_ref) ** 2, axis=0, keepdims=True)
    ref_train = (x - mean_ref) / jnp.sqrt(var_ref + eps) * w + b
    assert jnp.allclose(y_train, ref_train, atol=1e-4, rtol=1e-5), "train output mismatch"

    # fused running-stat momentum update (uses the *unbiased* batch variance)
    var_unbiased = var_ref * (batch / (batch - 1))
    exp_rm = 0.1 * mean_ref[0]
    exp_rv = 0.9 * 1.0 + 0.1 * var_unbiased[0]
    assert jnp.allclose(bn.running_mean[t_train], exp_rm, atol=1e-5, rtol=1e-5), "running_mean mismatch"
    assert jnp.allclose(bn.running_var[t_train], exp_rv, atol=1e-5, rtol=1e-5), "running_var mismatch"
    # other timesteps untouched (only row t rewritten via the aliased output)
    assert jnp.allclose(bn.running_mean[0], jnp.zeros((num_features,))), "row 0 mean clobbered"
    assert jnp.allclose(bn.running_var[0], jnp.ones((num_features,))), "row 0 var clobbered"
    # lane-padding columns of the persistent buffers keep their init values
    if bn._c_padded != num_features:
        assert jnp.allclose(bn._running_mean[t_train, 0, num_features:], 0.0), "pad mean clobbered"
        assert jnp.allclose(bn._running_var[t_train, 0, num_features:], 1.0), "pad var clobbered"

    # --- eval-mode forward at a time index past max_length (clamps to last) ---
    y_eval = jax.block_until_ready(bn(x, time=max_length + 5, training=False))
    rm = bn.running_mean[max_length - 1]
    rv = bn.running_var[max_length - 1]
    ref_eval = (x - rm) / jnp.sqrt(rv + eps) * w + b
    assert jnp.allclose(y_eval, ref_eval, atol=1e-4, rtol=1e-5), "eval output mismatch"


if __name__ == "__main__":
    root = jax.random.PRNGKey(0)
    k1, k2, k3 = jax.random.split(root, 3)
    # Small but representative shapes:
    #   C < 128           -> single masked edge tile (no wrapper pad/slice)
    #   C multiple of 128 -> two clean lane tiles (multi-tile "parallel" grid)
    #   C in between      -> three tiles, masked last tile
    _run_and_check(k1, batch=8, num_features=32, max_length=8, t_train=3)
    _run_and_check(k2, batch=4, num_features=256, max_length=5, t_train=1)
    _run_and_check(k3, batch=4, num_features=300, max_length=6, t_train=2)
    print("KERNEL_OK")
</pallas_src>

<mosaic_0001>
module attributes {stable_mosaic.version = 11 : i64} {
  func.func @_bn_train_kernel(%arg0: i32, %arg1: memref<1xi32, #tpu.memory_space<smem>>, %arg2: memref<8x128xf32, #tpu.memory_space<vmem>>, %arg3: memref<1x128xf32, #tpu.memory_space<vmem>>, %arg4: memref<1x128xf32, #tpu.memory_space<vmem>>, %arg5: memref<1x1x128xf32, #tpu.memory_space<vmem>>, %arg6: memref<1x1x128xf32, #tpu.memory_space<vmem>>, %arg7: memref<8x128xf32, #tpu.memory_space<vmem>>, %arg8: memref<1x1x128xf32, #tpu.memory_space<vmem>>, %arg9: memref<1x1x128xf32, #tpu.memory_space<vmem>>) attributes {dimension_semantics = [#tpu.dimension_semantics<parallel>], iteration_bounds = array<i64: 1>, scalar_prefetch = 1 : i64, scratch_operands = 0 : i64, tpu.core_type = #tpu.core_type<tc>, window_params = [{transform_indices = @transform_0, window_bounds = array<i64: 8, 128>}, {transform_indices = @transform_1, window_bounds = array<i64: 1, 128>}, {transform_indices = @transform_2, window_bounds = array<i64: 1, 128>}, {transform_indices = @transform_3, window_bounds = array<i64: 1, 1, 128>}, {transform_indices = @transform_4, window_bounds = array<i64: 1, 1, 128>}, {transform_indices = @transform_5, window_bounds = array<i64: 8, 128>}, {transform_indices = @transform_6, window_bounds = array<i64: 1, 1, 128>}, {transform_indices = @transform_7, window_bounds = array<i64: 1, 1, 128>}]} {
    %c0 = arith.constant 0 : index
    %c0_0 = arith.constant 0 : index
    %0 = vector.load %arg2[%c0, %c0_0] : memref<8x128xf32, #tpu.memory_space<vmem>>, vector<8x128xf32>
    %1 = tpu.iota {dimensions = array<i32: 1>} : vector<1x128xi32>
    %c128_i32 = arith.constant 128 : i32
    %2 = arith.muli %arg0, %c128_i32 : i32
    %3 = vector.broadcast %2 : i32 to vector<1x128xi32>
    %4 = arith.addi %1, %3 : vector<1x128xi32>
    %c32_i32 = arith.constant 32 : i32
    %5 = vector.broadcast %c32_i32 : i32 to vector<1x128xi32>
    %6 = arith.cmpi slt, %4, %5 : vector<1x128xi32>
    %cst = arith.constant 0.000000e+00 : f32
    %7 = vector.shape_cast %6 : vector<1x128xi1> to vector<1x128xi1>
    %8 = vector.broadcast %7 : vector<1x128xi1> to vector<8x128xi1>
    %9 = vector.broadcast %cst : f32 to vector<8x128xf32>
    %10 = arith.select %8, %0, %9 : vector<8x128xi1>, vector<8x128xf32>
    %cst_1 = arith.constant dense<0.000000e+00> : vector<128xf32>
    %11 = vector.multi_reduction <add>, %10, %cst_1 [0] : vector<8x128xf32> to vector<128xf32>
    %12 = vector.shape_cast %11 : vector<128xf32> to vector<1x128xf32>
    %cst_2 = arith.constant 8.000000e+00 : f32
    %13 = vector.broadcast %cst_2 : f32 to vector<1x128xf32>
    %14 = arith.divf %12, %13 : vector<1x128xf32>
    %15 = vector.broadcast %14 : vector<1x128xf32> to vector<8x128xf32>
    %16 = arith.subf %10, %15 : vector<8x128xf32>
    %17 = arith.mulf %16, %16 : vector<8x128xf32>
    %cst_3 = arith.constant dense<0.000000e+00> : vector<128xf32>
    %18 = vector.multi_reduction <add>, %17, %cst_3 [0] : vector<8x128xf32> to vector<128xf32>
    %19 = vector.shape_cast %18 : vector<128xf32> to vector<1x128xf32>
    %cst_4 = arith.constant 8.000000e+00 : f32
    %20 = vector.broadcast %cst_4 : f32 to vector<1x128xf32>
    %21 = arith.divf %19, %20 : vector<1x128xf32>
    %cst_5 = arith.constant 9.99999974E-6 : f32
    %22 = vector.broadcast %cst_5 : f32 to vector<1x128xf32>
    %23 = arith.addf %21, %22 : vector<1x128xf32>
    %24 = math.rsqrt %23 : vector<1x128xf32>
    %c0_6 = arith.constant 0 : index
    %c0_7 = arith.constant 0 : index
    %25 = vector.load %arg3[%c0_6, %c0_7] : memref<1x128xf32, #tpu.memory_space<vmem>>, vector<1x128xf32>
    %26 = arith.mulf %24, %25 : vector<1x128xf32>
    %27 = vector.broadcast %26 : vector<1x128xf32> to vector<8x128xf32>
    %28 = arith.mulf %16, %27 : vector<8x128xf32>
    %c0_8 = arith.constant 0 : index
    %c0_9 = arith.constant 0 : index
    %29 = vector.load %arg4[%c0_8, %c0_9] : memref<1x128xf32, #tpu.memory_space<vmem>>, vector<1x128xf32>
    %30 = vector.broadcast %29 : vector<1x128xf32> to vector<8x128xf32>
    %31 = arith.addf %28, %30 : vector<8x128xf32>
    %c0_10 = arith.constant 0 : index
    %c0_11 = arith.constant 0 : index
    %32 = vector.load %arg7[%c0_10, %c0_11] : memref<8x128xf32, #tpu.memory_space<vmem>>, vector<8x128xf32>
    tpu.vector_store %arg7[%c0_10, %c0_11], %31 {strides = array<i32>} : memref<8x128xf32, #tpu.memory_space<vmem>>, vector<8x128xf32>,
    %c0_12 = arith.constant 0 : index
    %c0_13 = arith.constant 0 : index
    %c0_14 = arith.constant 0 : index
    %33 = vector.load %arg5[%c0_12, %c0_13, %c0_14] : memref<1x1x128xf32, #tpu.memory_space<vmem>>, vector<1x1x128xf32>
    %cst_15 = arith.constant 0.899999976 : f32
    %34 = vector.broadcast %cst_15 : f32 to vector<1x1x128xf32>
    %35 = arith.mulf %34, %33 : vector<1x1x128xf32>
    %36 = vector.shape_cast %14 : vector<1x128xf32> to vector<1x1x128xf32>
    %cst_16 = arith.constant 1.000000e-01 : f32
    %37 = vector.broadcast %cst_16 : f32 to vector<1x1x128xf32>
    %38 = arith.mulf %37, %36 : vector<1x1x128xf32>
    %39 = arith.addf %35, %38 : vector<1x1x128xf32>
    %c0_17 = arith.constant 0 : index
    %c0_18 = arith.constant 0 : index
    %c0_19 = arith.constant 0 : index
    %40 = vector.load %arg6[%c0_17, %c0_18, %c0_19] : memref<1x1x128xf32, #tpu.memory_space<vmem>>, vector<1x1x128xf32>
    %cst_20 = arith.constant 0.899999976 : f32
    %41 = vector.broadcast %cst_20 : f32 to vector<1x1x128xf32>
    %42 = arith.mulf %41, %40 : vector<1x1x128xf32>
    %cst_21 = arith.constant 1.14285719 : f32
    %43 = vector.broadcast %cst_21 : f32 to vector<1x128xf32>
    %44 = arith.mulf %43, %21 : vector<1x128xf32>
    %45 = vector.shape_cast %44 : vector<1x128xf32> to vector<1x1x128xf32>
    %cst_22 = arith.constant 1.000000e-01 : f32
    %46 = vector.broadcast %cst_22 : f32 to vector<1x1x128xf32>
    %47 = arith.mulf %46, %45 : vector<1x1x128xf32>
    %48 = arith.addf %42, %47 : vector<1x1x128xf32>
    %49 = vector.shape_cast %6 : vector<1x128xi1> to vector<1x1x128xi1>
    %c0_23 = arith.constant 0 : index
    %c0_24 = arith.constant 0 : index
    %c0_25 = arith.constant 0 : index
    %50 = vector.load %arg5[%c0_23, %c0_24, %c0_25] : memref<1x1x128xf32, #tpu.memory_space<vmem>>, vector<1x1x128xf32>
    %51 = arith.select %49, %39, %50 : vector<1x1x128xi1>, vector<1x1x128xf32>
    %52 = vector.shape_cast %6 : vector<1x128xi1> to vector<1x1x128xi1>
    %c0_26 = arith.constant 0 : index
    %c0_27 = arith.constant 0 : index
    %c0_28 = arith.constant 0 : index
    %53 = vector.load %arg6[%c0_26, %c0_27, %c0_28] : memref<1x1x128xf32, #tpu.memory_space<vmem>>, vector<1x1x128xf32>
    %54 = arith.select %52, %48, %53 : vector<1x1x128xi1>, vector<1x1x128xf32>
    %c0_29 = arith.constant 0 : index
    %c0_30 = arith.constant 0 : index
    %c0_31 = arith.constant 0 : index
    %55 = vector.load %arg8[%c0_29, %c0_30, %c0_31] : memref<1x1x128xf32, #tpu.memory_space<vmem>>, vector<1x1x128xf32>
    tpu.vector_store %arg8[%c0_29, %c0_30, %c0_31], %51 {strides = array<i32>} : memref<1x1x128xf32, #tpu.memory_space<vmem>>, vector<1x1x128xf32>,
    %c0_32 = arith.constant 0 : index
    %c0_33 = arith.constant 0 : index
    %c0_34 = arith.constant 0 : index
    %56 = vector.load %arg9[%c0_32, %c0_33, %c0_34] : memref<1x1x128xf32, #tpu.memory_space<vmem>>, vector<1x1x128xf32>
    tpu.vector_store %arg9[%c0_32, %c0_33, %c0_34], %54 {strides = array<i32>} : memref<1x1x128xf32, #tpu.memory_space<vmem>>, vector<1x1x128xf32>,
    return
  }
  func.func @transform_0(%arg0: i32, %arg1: memref<1xi32, #tpu.memory_space<smem>>) -> (i32, i32) {
    %c0_i32 = arith.constant 0 : i32
    %c0_i32_0 = arith.constant 0 : i32
    return %c0_i32, %arg0 : i32, i32
  }
  func.func @transform_1(%arg0: i32, %arg1: memref<1xi32, #tpu.memory_space<smem>>) -> (i32, i32) {
    %c0_i32 = arith.constant 0 : i32
    %c0_i32_0 = arith.constant 0 : i32
    return %c0_i32, %arg0 : i32, i32
  }
  func.func @transform_2(%arg0: i32, %arg1: memref<1xi32, #tpu.memory_space<smem>>) -> (i32, i32) {
    %c0_i32 = arith.constant 0 : i32
    %c0_i32_0 = arith.constant 0 : i32
    return %c0_i32, %arg0 : i32, i32
  }
  func.func @transform_3(%arg0: i32, %arg1: memref<1xi32, #tpu.memory_space<smem>>) -> (i32, i32, i32) {
    %c0 = arith.constant 0 : index
    %0 = memref.load %arg1[%c0] : memref<1xi32, #tpu.memory_space<smem>>
    %c0_i32 = arith.constant 0 : i32
    %c0_i32_0 = arith.constant 0 : i32
    return %0, %c0_i32, %arg0 : i32, i32, i32
  }
  func.func @transform_4(%arg0: i32, %arg1: memref<1xi32, #tpu.memory_space<smem>>) -> (i32, i32, i32) {
    %c0 = arith.constant 0 : index
    %0 = memref.load %arg1[%c0] : memref<1xi32, #tpu.memory_space<smem>>
    %c0_i32 = arith.constant 0 : i32
    %c0_i32_0 = arith.constant 0 : i32
    return %0, %c0_i32, %arg0 : i32, i32, i32
  }
  func.func @transform_5(%arg0: i32, %arg1: memref<1xi32, #tpu.memory_space<smem>>) -> (i32, i32) {
    %c0_i32 = arith.constant 0 : i32
    %c0_i32_0 = arith.constant 0 : i32
    return %c0_i32, %arg0 : i32, i32
  }
  func.func @transform_6(%arg0: i32, %arg1: memref<1xi32, #tpu.memory_space<smem>>) -> (i32, i32, i32) {
    %c0 = arith.constant 0 : index
    %0 = memref.load %arg1[%c0] : memref<1xi32, #tpu.memory_space<smem>>
    %c0_i32 = arith.constant 0 : i32
    %c0_i32_0 = arith.constant 0 : i32
    return %0, %c0_i32, %arg0 : i32, i32, i32
  }
  func.func @transform_7(%arg0: i32, %arg1: memref<1xi32, #tpu.memory_space<smem>>) -> (i32, i32, i32) {
    %c0 = arith.constant 0 : index
    %0 = memref.load %arg1[%c0] : memref<1xi32, #tpu.memory_space<smem>>
    %c0_i32 = arith.constant 0 : i32
    %c0_i32_0 = arith.constant 0 : i32
    return %0, %c0_i32, %arg0 : i32, i32, i32
  }
}

</mosaic_0001>

<llo_original>
// kernel: step.1
$region0: #{step.1}
  #allocation0 [shape = 'u32[]', space=smem, size = 0x4, offset = 0x4, fixed_abs, tag = 'smem constant byte address 0x4 - core index']
  #allocation1 [shape = 'u32[72,128]{1,0:T(1,128)}', space=vmem, size = 0x9000, scoped, tag = 'internal scratch']
  #allocation2 [shape = 's32[1]{0}', space=sflag, size = 0x4, scoped, tag = 'scoped memory for step.1']
  #allocation3 [shape = 's32[1]{0:T(128)S(6)}', space=smem, size = 0x200, scoped, tag = 'prefetched SMEM operand 0']
  %s0 = inlined_call_operand.<no memory space> [shape: s32[1], index: 0, kind: input, shape index: {}]
  %s1 = inlined_call_operand.hbm [shape: f32[8,32], index: 1, kind: input, shape index: {}]
  %s2 = inlined_call_operand.vmem [shape: f32[1,128], index: 2, kind: input, shape index: {}]
  %s3 = inlined_call_operand.vmem [shape: f32[1,128], index: 3, kind: input, shape index: {}]
  %s4 = inlined_call_operand.hbm [shape: f32[8,1,128], index: 4, kind: input, shape index: {}, may-alias: {4,7}]
  %s5 = inlined_call_operand.hbm [shape: f32[8,1,128], index: 5, kind: input, shape index: {}, may-alias: {5,8}]
  %s6 = inlined_call_operand.hbm [shape: f32[8,32], index: 6, kind: output, shape index: {0}]
  %s7 = inlined_call_operand.hbm [shape: f32[8,1,128], index: 7, kind: output, shape index: {1}, may-alias: {4,7}]
  %s8 = inlined_call_operand.hbm [shape: f32[8,1,128], index: 8, kind: output, shape index: {2}, may-alias: {5,8}]
  %9 = xla_tuple %s6, %s7, %s8
  %s10 = sld [smem:[#allocation0]]
  $region58: #{step.1} parent=0
    _
  %s12 = ssub.s32 1, %s10
  %s13 = scalar_select 0, %s12, %s10
  %14 = sst [smem:[#allocation3]] %s0
  $region1: #{step.1} parent=0
    #allocation4 [shape = 'u8[4096]{0}', space=vmem, size = 0x1000, scoped, tag = 'input window, operand 1, single buffered']
    #allocation5 [shape = 's32[1]{0}', space=sflag, size = 0x4, scoped, tag = 'scoped memory for step.1']
    #allocation6 [shape = 's32[1]{0}', space=sflag, size = 0x4, scoped, tag = 'scoped memory for step.1']
    #allocation7 [shape = 'u8[512]{0}', space=vmem, size = 0x400, scoped, tag = 'input window, operand 4, single buffered']
    #allocation8 [shape = 's32[1]{0}', space=sflag, size = 0x4, scoped, tag = 'scoped memory for step.1']
    #allocation9 [shape = 'u8[512]{0}', space=vmem, size = 0x400, scoped, tag = 'input window, operand 5, single buffered']
    #allocation10 [shape = 'u8[4096]{0}', space=vmem, size = 0x1000, scoped, tag = 'output window, operand 0, single buffered']
    #allocation11 [shape = 'u8[512]{0}', space=vmem, size = 0x400, scoped, tag = 'output window, operand 1, single buffered']
    #allocation12 [shape = 's32[1]{0}', space=sflag, size = 0x4, scoped, tag = 'scoped memory for step.1']
    #allocation13 [shape = 'u8[512]{0}', space=vmem, size = 0x400, scoped, tag = 'output window, operand 2, single buffered']
    %15 = vsyncpa [#allocation5], 0
    %16 = vsyncpa [#allocation8], 0
    %17 = vsyncpa [#allocation6], 0
    %18 = vsyncpa [#allocation12], 0
    // Predicated region
    $region2: #{step.1} parent=1 // pred_check
      _
    $region3: #{step.1} parent=1 // pred_check_branch
      %20 = sbr.rel (0) target = $region5
    $region4: #{step.1} parent=1 // pred_region
      %22 = vsyncadd [#allocation5], 0
      %s24 = sshll.u32 %s1, 4
      %s25 = int_to_ptr.hbm [resolvable:$true] %s24
      %s26 = sshll.u32 [#allocation4], 4
      %s27 = int_to_ptr.vmem [resolvable:$true] %s26
      %29 = dma.hbm_to_vmem [thread:$0]  %s25, 128, %s27, [#allocation5]
    $region5: #{step.1} parent=1 // pred_fallthru
      _
    // Predicated region
    $region6: #{step.1} parent=1 // pred_check
      _
    $region7: #{step.1} parent=1 // pred_check_branch
      %31 = sbr.rel (0) target = $region9
    $region8: #{step.1} parent=1 // pred_region
      _
    $region9: #{step.1} parent=1 // pred_fallthru
      _
    // Predicated region
    $region10: #{step.1} parent=1 // pred_check
      _
    $region11: #{step.1} parent=1 // pred_check_branch
      %33 = sbr.rel (0) target = $region13
    $region12: #{step.1} parent=1 // pred_region
      _
    $region13: #{step.1} parent=1 // pred_fallthru
      _
    // Predicated region
    $region14: #{step.1} parent=1 // pred_check
      _
    $region15: #{step.1} parent=1 // pred_check_branch
      %35 = sbr.rel (0) target = $region17
    $region16: #{step.1} parent=1 // pred_region
      %s36 = sld [smem:[#allocation3]]
      %38 = vsyncadd [#allocation8], 0
      %s39 = scalar_lea.hbm %s4, %s36
      %s41 = sshll.u32 %s39, 4
      %s42 = int_to_ptr.hbm [resolvable:$true] %s41
      %s43 = sshll.u32 [#allocation7], 4
      %s44 = int_to_ptr.vmem [resolvable:$true] %s43
      %46 = dma.hbm_to_vmem [thread:$0]  %s42, 16, %s44, [#allocation8]
    $region17: #{step.1} parent=1 // pred_fallthru
      _
    // Predicated region
    $region18: #{step.1} parent=1 // pred_check
      _
    $region19: #{step.1} parent=1 // pred_check_branch
      %48 = sbr.rel (0) target = $region21
    $region20: #{step.1} parent=1 // pred_region
      %s49 = sld [smem:[#allocation3]]
      %51 = vsyncadd [#allocation8], 0
      %s52 = scalar_lea.hbm %s5, %s49
      %s54 = sshll.u32 %s52, 4
      %s55 = int_to_ptr.hbm [resolvable:$true] %s54
      %s56 = sshll.u32 [#allocation9], 4
      %s57 = int_to_ptr.vmem [resolvable:$true] %s56
      %59 = dma.hbm_to_vmem [thread:$0]  %s55, 16, %s57, [#allocation8]
    $region21: #{step.1} parent=1 // pred_fallthru
      _
    // Predicated region
    $region22: #{step.1} parent=1 // pred_check
      _
    $region23: #{step.1} parent=1 // pred_check_branch
      %61 = sbr.rel (0) target = $region25
    $region24: #{step.1} parent=1 // pred_region
      %63 = dma.done [#allocation5], 128
    $region25: #{step.1} parent=1 // pred_fallthru
      _
    // Predicated region
    $region26: #{step.1} parent=1 // pred_check
      _
    $region27: #{step.1} parent=1 // pred_check_branch
      %65 = sbr.rel (0) target = $region29
    $region28: #{step.1} parent=1 // pred_region
      %67 = dma.done [#allocation8], 16
    $region29: #{step.1} parent=1 // pred_fallthru
      _
    // Predicated region
    $region30: #{step.1} parent=1 // pred_check
      _
    $region31: #{step.1} parent=1 // pred_check_branch
      %69 = sbr.rel (0) target = $region33
    $region32: #{step.1} parent=1 // pred_region
      %71 = dma.done [#allocation8], 16
    $region33: #{step.1} parent=1 // pred_fallthru
      _
    %s72 = sld [smem:[#allocation3]]
    %s73 = sld [smem:[#allocation3]]
    %s74 = sld [smem:[#allocation3]]
    %s75 = sld [smem:[#allocation3]]
    %v76 = vld [vmem:[#allocation4] sm:$0xff]
    %v77 = vlaneseq
    %v78 = vand.u32 %v77, 127
    %s79 = smul.u32 0, 128
    %v80 = vstv %s79
    %v81 = vadd.s32 %v78, %v80
    %vm82 = vcmp.lt.s32.totalorder %v81, 32
    %v83 = vsel %vm82, 1, 0
    %vm84 = vcmp.eq.s32.totalorder %v83, 1
    %v85 = vsel %vm84, %v76, 0.0
    %v86 = vrot.slane %v85, 4
    %v87 = vadd.f32 %v85, %v86
    %v88 = vrot.slane %v87, 2
    %v89 = vadd.f32 %v87, %v88
    %v90 = vrot.slane %v89, 1
    %v91 = vadd.f32 %v89, %v90
    %v92 = vrcp.pop 8.0
    %v93 = vmul.f32 8.0, %v92
    %v94 = vsub.f32 1.0, %v93
    %v95 = vmul.f32 %v92, %v94
    %v96 = vadd.f32 %v92, %v95
    %vm97 = vweird.f32 %v92
    %v98 = vsel %vm97, %v92, %v96
    %v99 = vmul.f32 %v91, %v98
    %v100 = vsub.f32 %v85, %v99
    %v101 = vmul.f32 %v100, %v100
    %v102 = vrot.slane %v101, 4
    %v103 = vadd.f32 %v101, %v102
    %v104 = vrot.slane %v103, 2
    %v105 = vadd.f32 %v103, %v104
    %v106 = vrot.slane %v105, 1
    %v107 = vadd.f32 %v105, %v106
    %v108 = vmul.f32 %v107, %v98
    %v109 = vadd.f32 %v108, 1e-05
    %v110 = vrsqrt.pop %v109
    %v111 = vmul.f32 %v110, %v109
    %v112 = vmul.f32 %v111, %v110
    %v113 = vmul.f32 0.5, %v112
    %v114 = vsub.f32 1.5, %v113
    %v115 = vmul.f32 %v110, %v114
    %vm116 = vweird.f32 %v109
    %vm117 = vweird.f32 %v110
    %vm118 = vmor %vm116, %vm117
    %v119 = vsel %vm118, %v110, %v115
    %v120 = vld [vmem:[%s2] sm:$0x1]
    %v121 = vmul.f32 %v119, %v120
    %v122 = vperm.slane %v121, 0
    %v123 = vmul.f32 %v100, %v122
    %v124 = vld [vmem:[%s3] sm:$0x1]
    %v126 = vperm.slane %v124, 0
    %v128 = vadd.f32 %v123, %v126
    %129 = vst [vmem:[#allocation10] sm:$0xff] %v128
    %v130 = vld [vmem:[#allocation7] sm:$0x1]
    %v131 = vmul.f32 %v130, 0.9
    %v132 = vmul.f32 %v99, 0.1
    %v133 = vadd.f32 %v131, %v132
    %v134 = vld [vmem:[#allocation9] sm:$0x1]
    %v135 = vmul.f32 %v134, 0.9
    %v136 = vmul.f32 %v108, 1.1428572
    %v137 = vmul.f32 %v136, 0.1
    %v138 = vadd.f32 %v135, %v137
    %v139 = vsel %vm82, %v133, %v130
    %v140 = vsel %vm82, %v138, %v134
    %141 = vst [vmem:[#allocation11] sm:$0x1] %v139
    %142 = vst [vmem:[#allocation13] sm:$0x1] %v140
    // Predicated region
    $region34: #{step.1} parent=1 // pred_check
      _
    $region35: #{step.1} parent=1 // pred_check_branch
      %144 = sbr.rel (0) target = $region37
    $region36: #{step.1} parent=1 // pred_region
      %146 = vsyncadd [#allocation6], 0
      %s148 = sshll.u32 [#allocation10], 4
      %s149 = int_to_ptr.vmem [resolvable:$true] %s148
      %s150 = sshll.u32 %s6, 4
      %s151 = int_to_ptr.hbm [resolvable:$true] %s150
      %153 = dma.vmem_to_hbm [thread:$0]  %s149, 128, %s151, [#allocation6]
    $region37: #{step.1} parent=1 // pred_fallthru
      _
    // Predicated region
    $region38: #{step.1} parent=1 // pred_check
      _
    $region39: #{step.1} parent=1 // pred_check_branch
      %155 = sbr.rel (0) target = $region41
    $region40: #{step.1} parent=1 // pred_region
      %s156 = sld [smem:[#allocation3]]
      %158 = vsyncadd [#allocation12], 0
      %s159 = scalar_lea.hbm %s7, %s156
      %s161 = sshll.u32 [#allocation11], 4
      %s162 = int_to_ptr.vmem [resolvable:$true] %s161
      %s163 = sshll.u32 %s159, 4
      %s164 = int_to_ptr.hbm [resolvable:$true] %s163
      %166 = dma.vmem_to_hbm [thread:$0]  %s162, 16, %s164, [#allocation12]
    $region41: #{step.1} parent=1 // pred_fallthru
      _
    // Predicated region
    $region42: #{step.1} parent=1 // pred_check
      _
    $region43: #{step.1} parent=1 // pred_check_branch
      %168 = sbr.rel (0) target = $region45
    $region44: #{step.1} parent=1 // pred_region
      %s169 = sld [smem:[#allocation3]]
      %171 = vsyncadd [#allocation12], 0
      %s172 = scalar_lea.hbm %s8, %s169
      %s174 = sshll.u32 [#allocation13], 4
      %s175 = int_to_ptr.vmem [resolvable:$true] %s174
      %s176 = sshll.u32 %s172, 4
      %s177 = int_to_ptr.hbm [resolvable:$true] %s176
      %179 = dma.vmem_to_hbm [thread:$0]  %s175, 16, %s177, [#allocation12]
    $region45: #{step.1} parent=1 // pred_fallthru
      _
    // Predicated region
    $region46: #{step.1} parent=1 // pred_check
      _
    $region47: #{step.1} parent=1 // pred_check_branch
      %181 = sbr.rel (0) target = $region49
    $region48: #{step.1} parent=1 // pred_region
      %183 = dma.done [#allocation6], 128
    $region49: #{step.1} parent=1 // pred_fallthru
      _
    // Predicated region
    $region50: #{step.1} parent=1 // pred_check
      _
    $region51: #{step.1} parent=1 // pred_check_branch
      %185 = sbr.rel (0) target = $region53
    $region52: #{step.1} parent=1 // pred_region
      %187 = dma.done [#allocation12], 16
    $region53: #{step.1} parent=1 // pred_fallthru
      _
    // Predicated region
    $region54: #{step.1} parent=1 // pred_check
      _
    $region55: #{step.1} parent=1 // pred_check_branch
      %189 = sbr.rel (0) target = $region57
    $region56: #{step.1} parent=1 // pred_region
      %191 = dma.done [#allocation12], 16
    $region57: #{step.1} parent=1 // pred_fallthru
      _
    %192 = vsyncpa [#allocation5], 1
    %193 = vsyncpa [#allocation8], 1
    %194 = vsyncpa [#allocation6], 1
    %195 = vsyncpa [#allocation12], 1

</llo_original>
